<compile_context>
chip_gen: v7x
topology: tpu7x:2x2x1
jax: 0.10.0
libtpu: 0.0.40
codegen_flags: <defaults>
</compile_context>

<pallas_src>
import functools
import math

import jax
import jax.numpy as jnp
from jax import lax
from jax.experimental import pallas as pl
from jax.experimental.pallas import tpu as pltpu


# ------------------------------ Pallas kernel -------------------------------
def _dwconv_kernel(x_ref, wb_ref, o_ref, *, ksize, t_out, stride):
    """Depthwise conv as K shifted full-lane FMAs on a VMEM-resident tile.

    x_ref  : (T + 2*pad, B*C_out)  zero-padded, channel-last, batch on lanes
    wb_ref : (K + 1,     B*C_out)  rows 0..K-1 = per-lane taps, row K = bias
    o_ref  : (T_out,     B*C_out)  lane-dense output
    """
    def tap(k):
        if stride == 1:
            return x_ref[k:k + t_out, :]
        # strided tap for stride > 1 (output row t reads padded row k + t*stride)
        return x_ref[pl.ds(k, t_out, stride=stride), :]

    acc = tap(0) * wb_ref[0:1, :]
    for k in range(1, ksize):
        acc = acc + tap(k) * wb_ref[k:k + 1, :]
    o_ref[...] = (acc + wb_ref[ksize:ksize + 1, :]).astype(o_ref.dtype)


# --------------------------------- wrapper -----------------------------------
def depthwise_conv1d(x, weight, bias=None, *, stride=1, padding=0):
    """Forward of DepthwiseConv1D.

    x      : (B, C_in, T)        float32, PyTorch layout
    weight : (C_out, 1, K)       PyTorch Conv1d weight with groups=C_in
    bias   : (C_out,) or None
    returns: (B, C_out, T_out)   T_out = (T + 2*padding - K)//stride + 1
    """
    B, C_in, T = x.shape
    C_out, _, K = weight.shape
    assert C_out % C_in == 0, "out_channels should be divisible by in_channels"
    mult = C_out // C_in
    t_out = (T + 2 * padding - K) // stride + 1
    lanes = B * C_out

    # grouped-conv channel expansion: output channel o reads input channel o//mult
    x_e = jnp.repeat(x, mult, axis=1) if mult > 1 else x            # (B, C_out, T)
    # (B, C_out, T) -> (T, B*C_out), lane index = b*C_out + c, then pad the seq dim
    x_l = jnp.transpose(x_e, (2, 0, 1)).reshape(T, lanes)
    x_l = jnp.pad(x_l, ((padding, padding), (0, 0)))

    # one packed parameter slab: (K+1, B*C_out) = K weight rows + bias row
    w_l = jnp.tile(jnp.transpose(weight[:, 0, :], (1, 0)), (1, B))  # (K, B*C_out)
    b = jnp.zeros((C_out,), x.dtype) if bias is None else bias
    b_l = jnp.tile(b.reshape(1, C_out), (1, B))                     # (1, B*C_out)
    wb = jnp.concatenate([w_l, b_l], axis=0)                        # (K+1, B*C_out)

    kern = functools.partial(_dwconv_kernel, ksize=K, t_out=t_out, stride=stride)
    out_l = pl.pallas_call(
        kern,
        out_shape=jax.ShapeDtypeStruct((t_out, lanes), x.dtype),
        compiler_params=pltpu.CompilerParams(vmem_limit_bytes=32 * 1024 * 1024),
    )(x_l, wb)

    # (T_out, B*C_out) -> (B, C_out, T_out)
    return jnp.transpose(out_l.reshape(t_out, B, C_out), (1, 2, 0))


# ----------------------------------- main ------------------------------------
if __name__ == "__main__":
    # small shapes consistent with the module; multiplier=2 exercises groups
    B, C_IN, T = 2, 32, 16
    MULT = 2
    C_OUT = C_IN * MULT              # 64  -> B*C_OUT = 128 lanes (full vreg width)
    K, STRIDE, PAD = 5, 1, 2         # 'same' depthwise conv

    key = jax.random.PRNGKey(0)
    kx, kw, kb = jax.random.split(key, 3)
    x = jax.random.normal(kx, (B, C_IN, T), jnp.float32)
    weight = jax.random.normal(kw, (C_OUT, 1, K), jnp.float32) / math.sqrt(K)
    bias = jax.random.normal(kb, (C_OUT,), jnp.float32) * 0.1

    fwd = jax.jit(functools.partial(depthwise_conv1d, stride=STRIDE, padding=PAD))
    out = jax.block_until_ready(fwd(x, weight, bias))

    # reference: XLA grouped conv == torch.nn.Conv1d(groups=C_IN) forward
    ref = lax.conv_general_dilated(
        x, weight, window_strides=(STRIDE,), padding=[(PAD, PAD)],
        dimension_numbers=("NCH", "OIH", "NCH"), feature_group_count=C_IN,
    ) + bias[None, :, None]

    assert out.shape == (B, C_OUT, (T + 2 * PAD - K) // STRIDE + 1)
    assert bool(jnp.all(jnp.isfinite(out)))
    assert bool(jnp.allclose(out, ref, atol=1e-5, rtol=1e-5))
    print("KERNEL_OK")
</pallas_src>

<mosaic_0001>
module attributes {stable_mosaic.version = 11 : i64} {
  func.func @_dwconv_kernel(%arg0: memref<20x128xf32, #tpu.memory_space<vmem>>, %arg1: memref<6x128xf32, #tpu.memory_space<vmem>>, %arg2: memref<16x128xf32, #tpu.memory_space<vmem>>) attributes {dimension_semantics = [], scalar_prefetch = 0 : i64, scratch_operands = 0 : i64, tpu.core_type = #tpu.core_type<tc>} {
    %c0 = arith.constant 0 : index
    %c0_0 = arith.constant 0 : index
    %0 = vector.load %arg0[%c0, %c0_0] : memref<20x128xf32, #tpu.memory_space<vmem>>, vector<16x128xf32>
    %c0_1 = arith.constant 0 : index
    %c0_2 = arith.constant 0 : index
    %1 = vector.load %arg1[%c0_1, %c0_2] : memref<6x128xf32, #tpu.memory_space<vmem>>, vector<1x128xf32>
    %2 = vector.broadcast %1 : vector<1x128xf32> to vector<16x128xf32>
    %3 = arith.mulf %0, %2 : vector<16x128xf32>
    %c1 = arith.constant 1 : index
    %c0_3 = arith.constant 0 : index
    %4 = vector.load %arg0[%c1, %c0_3] : memref<20x128xf32, #tpu.memory_space<vmem>>, vector<16x128xf32>
    %c1_4 = arith.constant 1 : index
    %c0_5 = arith.constant 0 : index
    %5 = vector.load %arg1[%c1_4, %c0_5] : memref<6x128xf32, #tpu.memory_space<vmem>>, vector<1x128xf32>
    %6 = vector.broadcast %5 : vector<1x128xf32> to vector<16x128xf32>
    %7 = arith.mulf %4, %6 : vector<16x128xf32>
    %8 = arith.addf %3, %7 : vector<16x128xf32>
    %c2 = arith.constant 2 : index
    %c0_6 = arith.constant 0 : index
    %9 = vector.load %arg0[%c2, %c0_6] : memref<20x128xf32, #tpu.memory_space<vmem>>, vector<16x128xf32>
    %c2_7 = arith.constant 2 : index
    %c0_8 = arith.constant 0 : index
    %10 = vector.load %arg1[%c2_7, %c0_8] : memref<6x128xf32, #tpu.memory_space<vmem>>, vector<1x128xf32>
    %11 = vector.broadcast %10 : vector<1x128xf32> to vector<16x128xf32>
    %12 = arith.mulf %9, %11 : vector<16x128xf32>
    %13 = arith.addf %8, %12 : vector<16x128xf32>
    %c3 = arith.constant 3 : index
    %c0_9 = arith.constant 0 : index
    %14 = vector.load %arg0[%c3, %c0_9] : memref<20x128xf32, #tpu.memory_space<vmem>>, vector<16x128xf32>
    %c3_10 = arith.constant 3 : index
    %c0_11 = arith.constant 0 : index
    %15 = vector.load %arg1[%c3_10, %c0_11] : memref<6x128xf32, #tpu.memory_space<vmem>>, vector<1x128xf32>
    %16 = vector.broadcast %15 : vector<1x128xf32> to vector<16x128xf32>
    %17 = arith.mulf %14, %16 : vector<16x128xf32>
    %18 = arith.addf %13, %17 : vector<16x128xf32>
    %c4 = arith.constant 4 : index
    %c0_12 = arith.constant 0 : index
    %19 = vector.load %arg0[%c4, %c0_12] : memref<20x128xf32, #tpu.memory_space<vmem>>, vector<16x128xf32>
    %c4_13 = arith.constant 4 : index
    %c0_14 = arith.constant 0 : index
    %20 = vector.load %arg1[%c4_13, %c0_14] : memref<6x128xf32, #tpu.memory_space<vmem>>, vector<1x128xf32>
    %21 = vector.broadcast %20 : vector<1x128xf32> to vector<16x128xf32>
    %22 = arith.mulf %19, %21 : vector<16x128xf32>
    %23 = arith.addf %18, %22 : vector<16x128xf32>
    %c5 = arith.constant 5 : index
    %c0_15 = arith.constant 0 : index
    %24 = vector.load %arg1[%c5, %c0_15] : memref<6x128xf32, #tpu.memory_space<vmem>>, vector<1x128xf32>
    %25 = vector.broadcast %24 : vector<1x128xf32> to vector<16x128xf32>
    %26 = arith.addf %23, %25 : vector<16x128xf32>
    %c0_16 = arith.constant 0 : index
    %c0_17 = arith.constant 0 : index
    %27 = vector.load %arg2[%c0_16, %c0_17] : memref<16x128xf32, #tpu.memory_space<vmem>>, vector<16x128xf32>
    tpu.vector_store %arg2[%c0_16, %c0_17], %26 {strides = array<i32>} : memref<16x128xf32, #tpu.memory_space<vmem>>, vector<16x128xf32>,
    return
  }
}

</mosaic_0001>

<llo_original>
// kernel: tile.13
$region0: #{tile.13}
  %s0 = inlined_call_operand.vmem [shape: f32[5,2,64], index: 0, kind: input, shape index: {}]
  %s1 = inlined_call_operand.vmem [shape: f32[5,128], index: 1, kind: output, shape index: {}]
  $region1: #{tile.13} parent=0
    #allocation0 [shape = 'u8[20480]{0}', space=vmem, size = 0x5000, scoped, tag = 'scoped mem for input reshape']
    %s3 = sshllo.u32 0, 2
    %s4 = smul.addr 2, 4
    %s5 = scalar_lea.vmem %s0, %s4
    %v6 = vld [vmem:[%s5] sm:%s3]
    %s7 = scalar_lea.vmem [#allocation0], 32
    %8 = vst [vmem:[%s7] sm:%s3] %v6
    %s9 = smul.addr 2, 3
    %s10 = scalar_lea.vmem %s0, %s9
    %v11 = vld [vmem:[%s10] sm:%s3]
    %s12 = scalar_lea.vmem [#allocation0], 24
    %13 = vst [vmem:[%s12] sm:%s3] %v11
    %s14 = smul.addr 2, 2
    %s15 = scalar_lea.vmem %s0, %s14
    %v16 = vld [vmem:[%s15] sm:%s3]
    %s17 = scalar_lea.vmem [#allocation0], 16
    %18 = vst [vmem:[%s17] sm:%s3] %v16
    %s19 = scalar_lea.vmem %s0, 2
    %v20 = vld [vmem:[%s19] sm:%s3]
    %s21 = scalar_lea.vmem [#allocation0], 8
    %22 = vst [vmem:[%s21] sm:%s3] %v20
    %v23 = vld [vmem:[%s0] sm:%s3]
    %24 = vst [vmem:[#allocation0] sm:%s3] %v23
    %v25 = vld [vmem:[#allocation0] ss:$8 sm:$0xf]
    %s26 = scalar_lea.vmem [#allocation0], 28
    %v27 = vld [vmem:[%s26] sm:$0x10]
    %vm28 = vcmask 1044484
    %v29 = vsel %vm28, %v27, %v25
    %vm30 = vcmask 523264
    %31 = vst.msk [vmem:[%s1] sm:$0x1f] %vm30, %v29
    %s32 = scalar_lea.vmem [#allocation0], 1
    %v33 = vld [vmem:[%s32] ss:$8 sm:$0xf]
    %s34 = scalar_lea.vmem [#allocation0], 29
    %v35 = vld [vmem:[%s34] sm:$0x10]
    %vm36 = vcmask 1044484
    %v37 = vsel %vm36, %v35, %v33
    %38 = vrot.lane.b32.xlu0 %v37, 64
    %v39 = vpop.permute.xlu0 %38
    %vm40 = vcmask 1048064
    %41 = vst.msk [vmem:[%s1] sm:$0x1f] %vm40, %v39

// kernel: depthwise_conv1d.1
$region0: #{depthwise_conv1d.1}
  #allocation0 [shape = 'u32[]', space=smem, size = 0x4, offset = 0x4, fixed_abs, tag = 'smem constant byte address 0x4 - core index']
  #allocation1 [shape = 'u32[144,128]{1,0:T(1,128)}', space=vmem, size = 0x12000, scoped, tag = 'internal scratch']
  %s0 = inlined_call_operand.vmem [shape: f32[20,128], index: 0, kind: input, shape index: {}]
  %s1 = inlined_call_operand.vmem [shape: f32[6,128], index: 1, kind: input, shape index: {}]
  %s2 = inlined_call_operand.vmem [shape: f32[16,128], index: 2, kind: output, shape index: {}]
  %s3 = sld [smem:[#allocation0]]
  $region18: #{depthwise_conv1d.1} parent=0
    _
  %s5 = ssub.s32 1, %s3
  %s6 = scalar_select 0, %s5, %s3
  // Predicated region
  $region2: #{depthwise_conv1d.1} parent=0 // pred_check
    _
  $region3: #{depthwise_conv1d.1} parent=0 // pred_check_branch
    %8 = sbr.rel (0) target = $region5
  $region4: #{depthwise_conv1d.1} parent=0 // pred_region
    _
  $region5: #{depthwise_conv1d.1} parent=0 // pred_fallthru
    _
  // Predicated region
  $region6: #{depthwise_conv1d.1} parent=0 // pred_check
    _
  $region7: #{depthwise_conv1d.1} parent=0 // pred_check_branch
    %10 = sbr.rel (0) target = $region9
  $region8: #{depthwise_conv1d.1} parent=0 // pred_region
    _
  $region9: #{depthwise_conv1d.1} parent=0 // pred_fallthru
    _
  %v11 = vld [vmem:[%s0] sm:$0xff]
  %v12 = vld [vmem:[%s0 + $0x8] sm:$0xff]
  %v13 = vld [vmem:[%s1] sm:$0x1]
  %v14 = vlaneseq
  %v15 = vshrl.u32 %v14, 7
  %v16 = vsub.s32 0, %v15
  %v17 = vrot.slane %v13, %v16
  %v18 = vmul.f32 %v11, %v17
  %v19 = vmul.f32 %v12, %v17
  %v20 = vld [vmem:[%s0 + $0x1] sm:$0xff]
  %v21 = vld [vmem:[%s0 + $0x9] sm:$0xff]
  %v22 = vld [vmem:[%s1 + $0x1] sm:$0x1]
  %v23 = vlaneseq
  %v24 = vshrl.u32 %v23, 7
  %v25 = vsub.s32 0, %v24
  %v26 = vrot.slane %v22, %v25
  %v27 = vmul.f32 %v20, %v26
  %v28 = vmul.f32 %v21, %v26
  %v29 = vadd.f32 %v18, %v27
  %v30 = vadd.f32 %v19, %v28
  %v31 = vld [vmem:[%s0 + $0x2] sm:$0xff]
  %v32 = vld [vmem:[%s0 + $0xa] sm:$0xff]
  %v33 = vld [vmem:[%s1 + $0x2] sm:$0x1]
  %v34 = vlaneseq
  %v35 = vshrl.u32 %v34, 7
  %v36 = vsub.s32 0, %v35
  %v37 = vrot.slane %v33, %v36
  %v38 = vmul.f32 %v31, %v37
  %v39 = vmul.f32 %v32, %v37
  %v40 = vadd.f32 %v29, %v38
  %v41 = vadd.f32 %v30, %v39
  %v42 = vld [vmem:[%s0 + $0x3] sm:$0xff]
  %v43 = vld [vmem:[%s0 + $0xb] sm:$0xff]
  %v44 = vld [vmem:[%s1 + $0x3] sm:$0x1]
  %v45 = vlaneseq
  %v46 = vshrl.u32 %v45, 7
  %v47 = vsub.s32 0, %v46
  %v48 = vrot.slane %v44, %v47
  %v49 = vmul.f32 %v42, %v48
  %v50 = vmul.f32 %v43, %v48
  %v51 = vadd.f32 %v40, %v49
  %v52 = vadd.f32 %v41, %v50
  %v53 = vld [vmem:[%s0 + $0x4] sm:$0xff]
  %v54 = vld [vmem:[%s0 + $0xc] sm:$0xff]
  %v55 = vld [vmem:[%s1 + $0x4] sm:$0x1]
  %v56 = vlaneseq
  %v57 = vshrl.u32 %v56, 7
  %v58 = vsub.s32 0, %v57
  %v59 = vrot.slane %v55, %v58
  %v60 = vmul.f32 %v53, %v59
  %v61 = vmul.f32 %v54, %v59
  %v62 = vadd.f32 %v51, %v60
  %v63 = vadd.f32 %v52, %v61
  %v64 = vld [vmem:[%s1 + $0x5] sm:$0x1]
  %v65 = vlaneseq
  %v66 = vshrl.u32 %v65, 7
  %v67 = vsub.s32 0, %v66
  %v68 = vrot.slane %v64, %v67
  %v69 = vadd.f32 %v62, %v68
  %v70 = vadd.f32 %v63, %v68
  %71 = vst [vmem:[%s2] sm:$0xff] %v69
  %72 = vst [vmem:[%s2 + $0x8] sm:$0xff] %v70
  // Predicated region
  $region10: #{depthwise_conv1d.1} parent=0 // pred_check
    _
  $region11: #{depthwise_conv1d.1} parent=0 // pred_check_branch
    %74 = sbr.rel (0) target = $region13
  $region12: #{depthwise_conv1d.1} parent=0 // pred_region
    _
  $region13: #{depthwise_conv1d.1} parent=0 // pred_fallthru
    _
  // Predicated region
  $region14: #{depthwise_conv1d.1} parent=0 // pred_check
    _
  $region15: #{depthwise_conv1d.1} parent=0 // pred_check_branch
    %76 = sbr.rel (0) target = $region17
  $region16: #{depthwise_conv1d.1} parent=0 // pred_region
    _
  $region17: #{depthwise_conv1d.1} parent=0 // pred_fallthru
    _

</llo_original>
